<compile_context>
chip_gen: v6e
topology: v6e:2x2x1
jax: 0.10.0
libtpu: 0.0.40
codegen_flags: <defaults>
</compile_context>

<pallas_src>
import jax
import jax.numpy as jnp
from jax import lax
from jax.experimental import pallas as pl
from jax.experimental.pallas import tpu as pltpu


def _round_up(x, m):
    return (x + m - 1) // m * m


def _net_kernel(idx_ref, w_eff_ref, b1_ref, w2_ref, b2_ref, w3_ref, b3_ref,
                out_ref):
    TB, LV = idx_ref.shape                       # LV = L * V

    # Multi-hot selector with ONE compare + ONE cast (VALU-minimal).
    # idx_ref is the lane-repeated, position-shifted index, so
    #   onehot[b, lane] = (lane == idx[b, lane//V] + (lane//V)*V)
    lane_iota = lax.broadcasted_iota(jnp.int32, (TB, LV), 1)
    onehot = (lane_iota == idx_ref[...]).astype(jnp.bfloat16)        # (TB, L*V)

    # Fused (embedding lookup + first Linear): single MXU matmul, f32 accum.
    h1 = jnp.dot(onehot, w_eff_ref[...],
                 preferred_element_type=jnp.float32) + b1_ref[...]   # (TB, 128)

    # hidden2 + relu
    h2 = jnp.dot(h1.astype(jnp.bfloat16), w2_ref[...],
                 preferred_element_type=jnp.float32) + b2_ref[...]   # (TB, 128)
    h2 = jnp.maximum(h2, 0.0)

    # output layer (lane-dense, 128-wide padded); bf16 store halves writeback.
    out = jnp.dot(h2.astype(jnp.bfloat16), w3_ref[...],
                  preferred_element_type=jnp.float32) + b3_ref[...]  # (TB, 128)
    out_ref[...] = out.astype(out_ref.dtype)


def prepare_params(emb, w1, b1, w2, b2, w3, b3):
    """One-time weight prep, hoisted out of the per-call path.

    emb: (V, E); w1: (L*E, H1); w2: (H1, H2); w3: (H2, O)  (PyTorch weight.T);
    biases: (1, out).  Returns padded bf16/f32 tensors ready for the kernel.
    """
    V, E = emb.shape
    LE, H1 = w1.shape
    L = LE // E
    assert L * E == LE
    H2 = w2.shape[1]
    OUT = w3.shape[1]
    # Keep 128-wide padding (don't pad to 256: MXU is not the bottleneck).
    H1P, H2P, OP = _round_up(H1, 128), _round_up(H2, 128), _round_up(OUT, 128)

    # Fuse the embedding table into the first Linear:
    #   W_eff[l*V + v, :] = emb[v] @ W1[l*E:(l+1)*E, :]          shape (L*V, H1)
    w_eff = jnp.einsum('ve,leh->lvh', emb.astype(jnp.float32),
                       w1.reshape(L, E, H1).astype(jnp.float32)).reshape(L * V, H1)

    def pad2(x, rows, cols):
        return jnp.pad(x, ((0, rows - x.shape[0]), (0, cols - x.shape[1])))

    return dict(
        w_eff=pad2(w_eff, L * V, H1P).astype(jnp.bfloat16),
        b1=pad2(b1.reshape(1, H1).astype(jnp.float32), 1, H1P),
        w2=pad2(w2.astype(jnp.float32), H1P, H2P).astype(jnp.bfloat16),
        b2=pad2(b2.reshape(1, H2).astype(jnp.float32), 1, H2P),
        w3=pad2(w3.astype(jnp.float32), H2P, OP).astype(jnp.bfloat16),
        b3=pad2(b3.reshape(1, OUT).astype(jnp.float32), 1, OP),
        dims=(L, V, OUT),
    )


def net_forward(idx, params, *, tb=None):
    """idx: (B, L) int32; params: output of prepare_params. Returns (B, 2) f32."""
    B, L = idx.shape
    L_p, V, OUT = params["dims"]
    assert L == L_p
    w_eff, b1, w2, b2, w3, b3 = (params[k]
                                 for k in ("w_eff", "b1", "w2", "b2", "w3", "b3"))
    LV, H1P = w_eff.shape
    H2P = w2.shape[1]
    OP = w3.shape[1]

    # ---- batch tiling ----
    # Default tb: large enough to amortize ~0.35us/grid-step, but always >= 2
    # grid blocks when B > 8 so v7x's two TensorCores both get work
    # (dimension_semantics=("parallel",) shards the grid across cores).
    if tb is None:
        if B > 8:
            tb = min(1024, _round_up(pl.cdiv(B, 2), 8))
        else:
            tb = _round_up(max(B, 1), 8)
    tb = _round_up(tb, 8)
    B_pad = _round_up(B, tb)
    n_blocks = B_pad // tb

    # ---- per-call index prep (cheap XLA) ----
    # Shift by l*V and lane-repeat to (B, L*V) so the kernel needs only a
    # single compare against one flat iota (no per-position loop).
    # TODO(synk): out-of-range / negative indices silently select a zero row
    # (PyTorch nn.Embedding would raise).
    idx_s = idx.astype(jnp.int32) + (jnp.arange(L, dtype=jnp.int32) * V)[None, :]
    idx_rep = jnp.repeat(idx_s, V, axis=1)                        # (B, L*V) int32
    idx_rep = jnp.pad(idx_rep, ((0, B_pad - B), (0, 0)))          # pad rows -> harmless

    const = lambda i: (0, 0)
    flops = 2 * B_pad * (LV * H1P + H1P * H2P + H2P * OP)
    bytes_accessed = (idx_rep.size * 4
                      + (w_eff.size + w2.size + w3.size) * 2
                      + (b1.size + b2.size + b3.size) * 4
                      + B_pad * OP * 2)

    out = pl.pallas_call(
        _net_kernel,
        out_shape=jax.ShapeDtypeStruct((B_pad, OP), jnp.bfloat16),
        grid=(n_blocks,),
        in_specs=[
            pl.BlockSpec((tb, LV), lambda i: (i, 0)),    # idx_rep: tiled over batch
            pl.BlockSpec((LV, H1P), const),              # W_eff: resident
            pl.BlockSpec((1, H1P), const),               # b1
            pl.BlockSpec((H1P, H2P), const),             # W2
            pl.BlockSpec((1, H2P), const),               # b2
            pl.BlockSpec((H2P, OP), const),              # W3
            pl.BlockSpec((1, OP), const),                # b3
        ],
        out_specs=pl.BlockSpec((tb, OP), lambda i: (i, 0)),
        compiler_params=pltpu.CompilerParams(
            dimension_semantics=("parallel",),           # megacore / 2-TC sharding
            vmem_limit_bytes=32 * 1024 * 1024),
        cost_estimate=pl.CostEstimate(flops=flops, transcendentals=0,
                                      bytes_accessed=bytes_accessed),
    )(idx_rep, w_eff, b1, w2, b2, w3, b3)

    # f32 API surface; the kernel's HBM writeback stays bf16.
    return out[:B, :OUT].astype(jnp.float32)


def _reference(idx, emb, w1, b1, w2, b2, w3, b3):
    B, L = idx.shape
    x = emb[idx]                                # (B, L, 50)
    x = x.reshape(B, L * emb.shape[1])          # (B, L*50)
    x = x @ w1 + b1                             # (B, 100)  (no relu)
    x = jnp.maximum(x @ w2 + b2, 0.0)           # (B, 10)
    return x @ w3 + b3                          # (B, 2)


if __name__ == "__main__":
    # Small, module-consistent shapes.
    n_feature = 32      # vocab size
    max_len = 8
    emb_dim = 50
    batch = 2

    key = jax.random.PRNGKey(0)
    k_idx, k_emb, k_w1, k_b1, k_w2, k_b2, k_w3, k_b3 = jax.random.split(key, 8)

    idx = jax.random.randint(k_idx, (batch, max_len), 0, n_feature, dtype=jnp.int32)

    # Deterministic synthetic parameters (shapes match nn.Embedding / nn.Linear).
    emb = jax.random.normal(k_emb, (n_feature, emb_dim), jnp.float32) * 0.1
    w1 = jax.random.normal(k_w1, (max_len * emb_dim, 100), jnp.float32) * 0.05
    b1 = jax.random.normal(k_b1, (1, 100), jnp.float32) * 0.05
    w2 = jax.random.normal(k_w2, (100, 10), jnp.float32) * 0.05
    b2 = jax.random.normal(k_b2, (1, 10), jnp.float32) * 0.05
    w3 = jax.random.normal(k_w3, (10, 2), jnp.float32) * 0.05
    b3 = jax.random.normal(k_b3, (1, 2), jnp.float32) * 0.05

    # One-time weight prep (hoisted out of the per-call path), then jit the
    # per-call forward; the prepared weights are captured as constants.
    params = prepare_params(emb, w1, b1, w2, b2, w3, b3)
    fwd = jax.jit(lambda i: net_forward(i, params))

    out = jax.block_until_ready(fwd(idx))

    ref = _reference(idx, emb, w1, b1, w2, b2, w3, b3)
    assert out.shape == (batch, 2)
    # bf16 MXU inputs / bf16 output store (f32 accumulation) -> looser tolerance.
    assert jnp.allclose(out, ref, atol=3e-2, rtol=3e-2), (out, ref)

    print("KERNEL_OK")
</pallas_src>

<mosaic_0001>
module attributes {stable_mosaic.version = 11 : i64} {
  func.func @_net_kernel(%arg0: i32, %arg1: memref<8x256xi32, #tpu.memory_space<vmem>>, %arg2: memref<256x128xbf16, #tpu.memory_space<vmem>>, %arg3: memref<1x128xf32, #tpu.memory_space<vmem>>, %arg4: memref<128x128xbf16, #tpu.memory_space<vmem>>, %arg5: memref<1x128xf32, #tpu.memory_space<vmem>>, %arg6: memref<128x128xbf16, #tpu.memory_space<vmem>>, %arg7: memref<1x128xf32, #tpu.memory_space<vmem>>, %arg8: memref<8x128xbf16, #tpu.memory_space<vmem>>) attributes {dimension_semantics = [#tpu.dimension_semantics<parallel>], iteration_bounds = array<i64: 1>, scalar_prefetch = 0 : i64, scratch_operands = 0 : i64, tpu.core_type = #tpu.core_type<tc>, window_params = [{transform_indices = @transform_0, window_bounds = array<i64: 8, 256>}, {pipeline_mode = #tpu.pipeline_mode<synchronous>, transform_indices = @transform_1, window_bounds = array<i64: 256, 128>}, {pipeline_mode = #tpu.pipeline_mode<synchronous>, transform_indices = @transform_2, window_bounds = array<i64: 1, 128>}, {pipeline_mode = #tpu.pipeline_mode<synchronous>, transform_indices = @transform_3, window_bounds = array<i64: 128, 128>}, {pipeline_mode = #tpu.pipeline_mode<synchronous>, transform_indices = @transform_4, window_bounds = array<i64: 1, 128>}, {pipeline_mode = #tpu.pipeline_mode<synchronous>, transform_indices = @transform_5, window_bounds = array<i64: 128, 128>}, {pipeline_mode = #tpu.pipeline_mode<synchronous>, transform_indices = @transform_6, window_bounds = array<i64: 1, 128>}, {transform_indices = @transform_7, window_bounds = array<i64: 8, 128>}]} {
    %0 = tpu.iota {dimensions = array<i32: 1>} : vector<8x256xi32>
    %c0 = arith.constant 0 : index
    %c0_0 = arith.constant 0 : index
    %1 = vector.load %arg1[%c0, %c0_0] : memref<8x256xi32, #tpu.memory_space<vmem>>, vector<8x256xi32>
    %2 = arith.cmpi eq, %0, %1 : vector<8x256xi32>
    %3 = arith.extui %2 : vector<8x256xi1> to vector<8x256xi32>
    %4 = arith.sitofp %3 : vector<8x256xi32> to vector<8x256xf32>
    %5 = arith.truncf %4 : vector<8x256xf32> to vector<8x256xbf16>
    %c0_1 = arith.constant 0 : index
    %c0_2 = arith.constant 0 : index
    %6 = vector.load %arg2[%c0_1, %c0_2] : memref<256x128xbf16, #tpu.memory_space<vmem>>, vector<256x128xbf16>
    %cst = arith.constant dense<0.000000e+00> : vector<8x128xf32>
    %7 = tpu.matmul %5, %6, %cst {dimension_numbers = #tpu.dot_dimension_numbers<[1], [0], [0], [1], [0, 0, 1, 1], [], []>} : vector<8x256xbf16>, vector<256x128xbf16>, vector<8x128xf32> -> vector<8x128xf32>
    %c0_3 = arith.constant 0 : index
    %c0_4 = arith.constant 0 : index
    %8 = vector.load %arg3[%c0_3, %c0_4] : memref<1x128xf32, #tpu.memory_space<vmem>>, vector<1x128xf32>
    %9 = vector.broadcast %8 : vector<1x128xf32> to vector<8x128xf32>
    %10 = arith.addf %7, %9 : vector<8x128xf32>
    %11 = arith.truncf %10 : vector<8x128xf32> to vector<8x128xbf16>
    %c0_5 = arith.constant 0 : index
    %c0_6 = arith.constant 0 : index
    %12 = vector.load %arg4[%c0_5, %c0_6] : memref<128x128xbf16, #tpu.memory_space<vmem>>, vector<128x128xbf16>
    %cst_7 = arith.constant dense<0.000000e+00> : vector<8x128xf32>
    %13 = tpu.matmul %11, %12, %cst_7 {dimension_numbers = #tpu.dot_dimension_numbers<[1], [0], [0], [1], [0, 0, 1, 1], [], []>} : vector<8x128xbf16>, vector<128x128xbf16>, vector<8x128xf32> -> vector<8x128xf32>
    %c0_8 = arith.constant 0 : index
    %c0_9 = arith.constant 0 : index
    %14 = vector.load %arg5[%c0_8, %c0_9] : memref<1x128xf32, #tpu.memory_space<vmem>>, vector<1x128xf32>
    %15 = vector.broadcast %14 : vector<1x128xf32> to vector<8x128xf32>
    %16 = arith.addf %13, %15 : vector<8x128xf32>
    %cst_10 = arith.constant 0.000000e+00 : f32
    %17 = vector.broadcast %cst_10 : f32 to vector<8x128xf32>
    %18 = arith.maximumf %16, %17 : vector<8x128xf32>
    %19 = arith.truncf %18 : vector<8x128xf32> to vector<8x128xbf16>
    %c0_11 = arith.constant 0 : index
    %c0_12 = arith.constant 0 : index
    %20 = vector.load %arg6[%c0_11, %c0_12] : memref<128x128xbf16, #tpu.memory_space<vmem>>, vector<128x128xbf16>
    %cst_13 = arith.constant dense<0.000000e+00> : vector<8x128xf32>
    %21 = tpu.matmul %19, %20, %cst_13 {dimension_numbers = #tpu.dot_dimension_numbers<[1], [0], [0], [1], [0, 0, 1, 1], [], []>} : vector<8x128xbf16>, vector<128x128xbf16>, vector<8x128xf32> -> vector<8x128xf32>
    %c0_14 = arith.constant 0 : index
    %c0_15 = arith.constant 0 : index
    %22 = vector.load %arg7[%c0_14, %c0_15] : memref<1x128xf32, #tpu.memory_space<vmem>>, vector<1x128xf32>
    %23 = vector.broadcast %22 : vector<1x128xf32> to vector<8x128xf32>
    %24 = arith.addf %21, %23 : vector<8x128xf32>
    %25 = arith.truncf %24 : vector<8x128xf32> to vector<8x128xbf16>
    %c0_16 = arith.constant 0 : index
    %c0_17 = arith.constant 0 : index
    %26 = vector.load %arg8[%c0_16, %c0_17] : memref<8x128xbf16, #tpu.memory_space<vmem>>, vector<8x128xbf16>
    tpu.vector_store %arg8[%c0_16, %c0_17], %25 {strides = array<i32>} : memref<8x128xbf16, #tpu.memory_space<vmem>>, vector<8x128xbf16>,
    return
  }
  func.func @transform_0(%arg0: i32) -> (i32, i32) {
    %c0_i32 = arith.constant 0 : i32
    %c0_i32_0 = arith.constant 0 : i32
    return %arg0, %c0_i32 : i32, i32
  }
  func.func @transform_1(%arg0: i32) -> (i32, i32) {
    %c0_i32 = arith.constant 0 : i32
    %c0_i32_0 = arith.constant 0 : i32
    %c0_i32_1 = arith.constant 0 : i32
    return %c0_i32, %c0_i32_0 : i32, i32
  }
  func.func @transform_2(%arg0: i32) -> (i32, i32) {
    %c0_i32 = arith.constant 0 : i32
    %c0_i32_0 = arith.constant 0 : i32
    %c0_i32_1 = arith.constant 0 : i32
    return %c0_i32, %c0_i32_0 : i32, i32
  }
  func.func @transform_3(%arg0: i32) -> (i32, i32) {
    %c0_i32 = arith.constant 0 : i32
    %c0_i32_0 = arith.constant 0 : i32
    %c0_i32_1 = arith.constant 0 : i32
    return %c0_i32, %c0_i32_0 : i32, i32
  }
  func.func @transform_4(%arg0: i32) -> (i32, i32) {
    %c0_i32 = arith.constant 0 : i32
    %c0_i32_0 = arith.constant 0 : i32
    %c0_i32_1 = arith.constant 0 : i32
    return %c0_i32, %c0_i32_0 : i32, i32
  }
  func.func @transform_5(%arg0: i32) -> (i32, i32) {
    %c0_i32 = arith.constant 0 : i32
    %c0_i32_0 = arith.constant 0 : i32
    %c0_i32_1 = arith.constant 0 : i32
    return %c0_i32, %c0_i32_0 : i32, i32
  }
  func.func @transform_6(%arg0: i32) -> (i32, i32) {
    %c0_i32 = arith.constant 0 : i32
    %c0_i32_0 = arith.constant 0 : i32
    %c0_i32_1 = arith.constant 0 : i32
    return %c0_i32, %c0_i32_0 : i32, i32
  }
  func.func @transform_7(%arg0: i32) -> (i32, i32) {
    %c0_i32 = arith.constant 0 : i32
    %c0_i32_0 = arith.constant 0 : i32
    return %arg0, %c0_i32 : i32, i32
  }
}

</mosaic_0001>

<llo_original>
// kernel: _lambda_.1
$region0: #{_lambda_.1}
  #allocation0 [shape = 'u32[]', space=smem, size = 0x4, offset = 0x4, fixed_abs, tag = 'smem constant byte address 0x4 - core index']
  #allocation1 [shape = 'u32[144,128]{1,0:T(1,128)}', space=vmem, size = 0x12000, scoped, tag = 'internal scratch']
  %s0 = inlined_call_operand.vmem [shape: s32[8,256], index: 0, kind: input, shape index: {}]
  %s1 = inlined_call_operand.hbm [shape: bf16[256,128], index: 1, kind: input, shape index: {}]
  %s2 = inlined_call_operand.vmem [shape: f32[1,128], index: 2, kind: input, shape index: {}]
  %s3 = inlined_call_operand.hbm [shape: bf16[128,128], index: 3, kind: input, shape index: {}]
  %s4 = inlined_call_operand.vmem [shape: f32[1,128], index: 4, kind: input, shape index: {}]
  %s5 = inlined_call_operand.vmem [shape: bf16[128,128], index: 5, kind: input, shape index: {}]
  %s6 = inlined_call_operand.vmem [shape: f32[1,128], index: 6, kind: input, shape index: {}]
  %s7 = inlined_call_operand.vmem [shape: bf16[8,128], index: 7, kind: output, shape index: {}]
  %s8 = sld [smem:[#allocation0]]
  $region46: #{_lambda_.1} parent=0
    _
  %s10 = ssub.s32 1, %s8
  %s11 = scalar_select 0, %s10, %s8
  $region1: #{_lambda_.1} parent=0
    #allocation2 [shape = 'u8[65536]{0}', space=vmem, size = 0x10000, scoped, tag = 'input window, operand 1, single buffered']
    #allocation3 [shape = 's32[1]{0}', space=sflag, size = 0x4, scoped, tag = 'scoped memory for _lambda_.1']
    #allocation4 [shape = 'u8[32768]{0}', space=vmem, size = 0x8000, scoped, tag = 'input window, operand 3, single buffered']
    #allocation5 [shape = 's32[1]{0}', space=sflag, size = 0x4, scoped, tag = 'scoped memory for _lambda_.1']
    %12 = vsyncpa [#allocation3], 0
    %13 = vsyncpa [#allocation5], 0
    // Predicated region
    $region2: #{_lambda_.1} parent=1 // pred_check
      _
    $region3: #{_lambda_.1} parent=1 // pred_check_branch
      %15 = sbr.rel (0) target = $region5
    $region4: #{_lambda_.1} parent=1 // pred_region
      _
    $region5: #{_lambda_.1} parent=1 // pred_fallthru
      _
    // Predicated region
    $region6: #{_lambda_.1} parent=1 // pred_check
      _
    $region7: #{_lambda_.1} parent=1 // pred_check_branch
      %17 = sbr.rel (0) target = $region9
    $region8: #{_lambda_.1} parent=1 // pred_region
      %s19 = ssub.s32 2048, 2048
      %20 = vsyncadd [#allocation3], %s19
      %s21 = sshll.u32 [#allocation2], 4
      %s22 = int_to_ptr.vmem [resolvable:$true] %s21
      %27 = dma.hbm_to_vmem [thread:$0]  %s1, 2048, %s22, [#allocation3], 64, 64, 4
    $region9: #{_lambda_.1} parent=1 // pred_fallthru
      _
    // Predicated region
    $region10: #{_lambda_.1} parent=1 // pred_check
      _
    $region11: #{_lambda_.1} parent=1 // pred_check_branch
      %29 = sbr.rel (0) target = $region13
    $region12: #{_lambda_.1} parent=1 // pred_region
      _
    $region13: #{_lambda_.1} parent=1 // pred_fallthru
      _
    // Predicated region
    $region14: #{_lambda_.1} parent=1 // pred_check
      _
    $region15: #{_lambda_.1} parent=1 // pred_check_branch
      %31 = sbr.rel (0) target = $region17
    $region16: #{_lambda_.1} parent=1 // pred_region
      %s33 = ssub.s32 1024, 1024
      %34 = vsyncadd [#allocation5], %s33
      %s35 = sshll.u32 [#allocation4], 4
      %s36 = int_to_ptr.vmem [resolvable:$true] %s35
      %41 = dma.hbm_to_vmem [thread:$0]  %s3, 1024, %s36, [#allocation5], 64, 64, 4
    $region17: #{_lambda_.1} parent=1 // pred_fallthru
      _
    // Predicated region
    $region18: #{_lambda_.1} parent=1 // pred_check
      _
    $region19: #{_lambda_.1} parent=1 // pred_check_branch
      %43 = sbr.rel (0) target = $region21
    $region20: #{_lambda_.1} parent=1 // pred_region
      _
    $region21: #{_lambda_.1} parent=1 // pred_fallthru
      _
    // Predicated region
    $region22: #{_lambda_.1} parent=1 // pred_check
      _
    $region23: #{_lambda_.1} parent=1 // pred_check_branch
      %45 = sbr.rel (0) target = $region25
    $region24: #{_lambda_.1} parent=1 // pred_region
      _
    $region25: #{_lambda_.1} parent=1 // pred_fallthru
      _
    // Predicated region
    $region26: #{_lambda_.1} parent=1 // pred_check
      _
    $region27: #{_lambda_.1} parent=1 // pred_check_branch
      %47 = sbr.rel (0) target = $region29
    $region28: #{_lambda_.1} parent=1 // pred_region
      _
    $region29: #{_lambda_.1} parent=1 // pred_fallthru
      _
    // Predicated region
    $region30: #{_lambda_.1} parent=1 // pred_check
      _
    $region31: #{_lambda_.1} parent=1 // pred_check_branch
      %49 = sbr.rel (0) target = $region33
    $region32: #{_lambda_.1} parent=1 // pred_region
      %50 = dma.done [#allocation3], 2048
    $region33: #{_lambda_.1} parent=1 // pred_fallthru
      _
    // Predicated region
    $region34: #{_lambda_.1} parent=1 // pred_check
      _
    $region35: #{_lambda_.1} parent=1 // pred_check_branch
      %52 = sbr.rel (0) target = $region37
    $region36: #{_lambda_.1} parent=1 // pred_region
      %53 = dma.done [#allocation5], 1024
    $region37: #{_lambda_.1} parent=1 // pred_fallthru
      _
    %v55 = vlaneseq
    %v56 = vand.u32 %v55, 127
    %v57 = vadd.s32 %v56, 128
    %v58 = vld [vmem:[%s0] sm:$0xff]
    %v59 = vld [vmem:[%s0 + $0x8] sm:$0xff]
    %vm60 = vcmp.eq.s32.totalorder %v56, %v58
    %vm61 = vcmp.eq.s32.totalorder %v57, %v59
    %v62 = vsel %vm60, 1, 0
    %v63 = vsel %vm61, 1, 0
    %v64 = vcvt.s32.f32 %v62
    %v65 = vcvt.s32.f32 %v63
    %v66 = vpack.c.bf16 %v64, %v64
    %v67 = vpack.c.bf16 %v65, %v65
    %v68 = vld [vmem:[#allocation2] sm:$0xf]
    %v69 = vld [vmem:[#allocation2 + $0x4] sm:$0xf]
    %v70 = vld [vmem:[#allocation2 + $0x8] sm:$0xf]
    %v71 = vld [vmem:[#allocation2 + $0xc] sm:$0xf]
    %v72 = vld [vmem:[#allocation2 + $0x10] sm:$0xf]
    %v73 = vld [vmem:[#allocation2 + $0x14] sm:$0xf]
    %v74 = vld [vmem:[#allocation2 + $0x18] sm:$0xf]
    %v75 = vld [vmem:[#allocation2 + $0x1c] sm:$0xf]
    %v76 = vld [vmem:[#allocation2 + $0x20] sm:$0xf]
    %v77 = vld [vmem:[#allocation2 + $0x24] sm:$0xf]
    %v78 = vld [vmem:[#allocation2 + $0x28] sm:$0xf]
    %v79 = vld [vmem:[#allocation2 + $0x2c] sm:$0xf]
    %v80 = vld [vmem:[#allocation2 + $0x30] sm:$0xf]
    %v81 = vld [vmem:[#allocation2 + $0x34] sm:$0xf]
    %v82 = vld [vmem:[#allocation2 + $0x38] sm:$0xf]
    %v83 = vld [vmem:[#allocation2 + $0x3c] sm:$0xf]
    %v84 = vld [vmem:[#allocation2 + $0x40] sm:$0xf]
    %v85 = vld [vmem:[#allocation2 + $0x44] sm:$0xf]
    %v86 = vld [vmem:[#allocation2 + $0x48] sm:$0xf]
    %v87 = vld [vmem:[#allocation2 + $0x4c] sm:$0xf]
    %v88 = vld [vmem:[#allocation2 + $0x50] sm:$0xf]
    %v89 = vld [vmem:[#allocation2 + $0x54] sm:$0xf]
    %v90 = vld [vmem:[#allocation2 + $0x58] sm:$0xf]
    %v91 = vld [vmem:[#allocation2 + $0x5c] sm:$0xf]
    %v92 = vld [vmem:[#allocation2 + $0x60] sm:$0xf]
    %v93 = vld [vmem:[#allocation2 + $0x64] sm:$0xf]
    %v94 = vld [vmem:[#allocation2 + $0x68] sm:$0xf]
    %v95 = vld [vmem:[#allocation2 + $0x6c] sm:$0xf]
    %v96 = vld [vmem:[#allocation2 + $0x70] sm:$0xf]
    %v97 = vld [vmem:[#allocation2 + $0x74] sm:$0xf]
    %v98 = vld [vmem:[#allocation2 + $0x78] sm:$0xf]
    %v99 = vld [vmem:[#allocation2 + $0x7c] sm:$0xf]
    %v100 = vld [vmem:[%s2] sm:$0x1]
    %v102 = vlaneseq
    %v103 = vshrl.u32 %v102, 7
    %v104 = vsub.s32 0, %v103
    %v105 = vrot.slane %v100, %v104
    %v139 = vunpack.c.l.b16 %v68
    %v140 = vunpack.c.l.b16 %v69
    %v141 = vunpack.c.l.b16 %v70
    %v142 = vunpack.c.l.b16 %v71
    %v143 = vunpack.c.l.b16 %v72
    %v144 = vunpack.c.l.b16 %v73
    %v145 = vunpack.c.l.b16 %v74
    %v146 = vunpack.c.l.b16 %v75
    %v147 = vunpack.c.l.b16 %v76
    %v148 = vunpack.c.l.b16 %v77
    %v149 = vunpack.c.l.b16 %v78
    %v150 = vunpack.c.l.b16 %v79
    %v151 = vunpack.c.l.b16 %v80
    %v152 = vunpack.c.l.b16 %v81
    %v153 = vunpack.c.l.b16 %v82
    %v154 = vunpack.c.l.b16 %v83
    %v155 = vunpack.c.l.b16 %v84
    %v156 = vunpack.c.l.b16 %v85
    %v157 = vunpack.c.l.b16 %v86
    %v158 = vunpack.c.l.b16 %v87
    %v159 = vunpack.c.l.b16 %v88
    %v160 = vunpack.c.l.b16 %v89
    %v161 = vunpack.c.l.b16 %v90
    %v162 = vunpack.c.l.b16 %v91
    %v163 = vunpack.c.l.b16 %v92
    %v164 = vunpack.c.l.b16 %v93
    %v165 = vunpack.c.l.b16 %v94
    %v166 = vunpack.c.l.b16 %v95
    %v167 = vunpack.c.l.b16 %v96
    %v168 = vunpack.c.l.b16 %v97
    %v169 = vunpack.c.l.b16 %v98
    %v170 = vunpack.c.l.b16 %v99
    %v171 = vpack.c.b16 %v140, %v139
    %v172 = vpack.c.b16 %v142, %v141
    %v173 = vpack.c.b16 %v144, %v143
    %v174 = vpack.c.b16 %v146, %v145
    %v175 = vpack.c.b16 %v148, %v147
    %v176 = vpack.c.b16 %v150, %v149
    %v177 = vpack.c.b16 %v152, %v151
    %v178 = vpack.c.b16 %v154, %v153
    %v179 = vpack.c.b16 %v156, %v155
    %v180 = vpack.c.b16 %v158, %v157
    %v181 = vpack.c.b16 %v160, %v159
    %v182 = vpack.c.b16 %v162, %v161
    %v183 = vpack.c.b16 %v164, %v163
    %v184 = vpack.c.b16 %v166, %v165
    %v185 = vpack.c.b16 %v168, %v167
    %v186 = vpack.c.b16 %v170, %v169
    %203 = vmatprep.subr.bf16.mxu0 0
    %204 = vmatpush1.bf16.msra.mxu0 %v178
    %205 = vmatprep.subr.bf16.mxu0 0
    %206 = vmatpush1.bf16.msra.mxu0 %v177
    %207 = vmatprep.subr.bf16.mxu0 0
    %208 = vmatpush1.bf16.msra.mxu0 %v176
    %209 = vmatprep.subr.bf16.mxu0 0
    %210 = vmatpush1.bf16.msra.mxu0 %v175
    %211 = vmatprep.subr.bf16.mxu0 0
    %212 = vmatpush1.bf16.msra.mxu0 %v174
    %213 = vmatprep.subr.bf16.mxu0 0
    %214 = vmatpush1.bf16.msra.mxu0 %v173
    %215 = vmatprep.subr.bf16.mxu0 0
    %216 = vmatpush1.bf16.msra.mxu0 %v172
    %217 = vmatprep.subr.bf16.mxu0 0
    %218 = vmatpush1.bf16.msra.mxu0 %v171
    %219 = vmatprep.subr.bf16.mxu0 0
    %220 = vmatpush2.bf16.msra.mxu0 %v186
    %221 = vmatprep.subr.bf16.mxu0 0
    %222 = vmatpush2.bf16.msra.mxu0 %v185
    %223 = vmatprep.subr.bf16.mxu0 0
    %224 = vmatpush2.bf16.msra.mxu0 %v184
    %225 = vmatprep.subr.bf16.mxu0 0
    %226 = vmatpush2.bf16.msra.mxu0 %v183
    %227 = vmatprep.subr.bf16.mxu0 0
    %228 = vmatpush2.bf16.msra.mxu0 %v182
    %229 = vmatprep.subr.bf16.mxu0 0
    %230 = vmatpush2.bf16.msra.mxu0 %v181
    %231 = vmatprep.subr.bf16.mxu0 0
    %232 = vmatpush2.bf16.msra.mxu0 %v180
    %233 = vmatprep.subr.bf16.mxu0 0
    %234 = vmatpush2.bf16.msra.mxu0 %v179
    %235 = vmatprep.mubr.bf16.mxu0 %v67
    %236 = vmatmul.mubr.bf16.gmra.mxu0 %v66
    %v237 = vpop.f32.mrf.mxu0
    %v238 = vadd.f32 %v105, %v237
    %v239 = vpop.f32.mrf.mxu0
    %v240 = vpop.f32.mrf.mxu0
    %v241 = vpop.f32.mrf.mxu0
    %242 = vdwg.mxu0
    %v243 = vpack.c.bf16 %v238, %v238
    %v244 = vld [vmem:[#allocation4] sm:$0xf]
    %v245 = vld [vmem:[#allocation4 + $0x4] sm:$0xf]
    %v246 = vld [vmem:[#allocation4 + $0x8] sm:$0xf]
    %v247 = vld [vmem:[#allocation4 + $0xc] sm:$0xf]
    %v248 = vld [vmem:[#allocation4 + $0x10] sm:$0xf]
    %v249 = vld [vmem:[#allocation4 + $0x14] sm:$0xf]
    %v250 = vld [vmem:[#allocation4 + $0x18] sm:$0xf]
    %v251 = vld [vmem:[#allocation4 + $0x1c] sm:$0xf]
    %v252 = vld [vmem:[#allocation4 + $0x20] sm:$0xf]
    %v253 = vld [vmem:[#allocation4 + $0x24] sm:$0xf]
    %v254 = vld [vmem:[#allocation4 + $0x28] sm:$0xf]
    %v255 = vld [vmem:[#allocation4 + $0x2c] sm:$0xf]
    %v256 = vld [vmem:[#allocation4 + $0x30] sm:$0xf]
    %v257 = vld [vmem:[#allocation4 + $0x34] sm:$0xf]
    %v258 = vld [vmem:[#allocation4 + $0x38] sm:$0xf]
    %v259 = vld [vmem:[#allocation4 + $0x3c] sm:$0xf]
    %v260 = vld [vmem:[%s4] sm:$0x1]
    %v262 = vlaneseq
    %v263 = vshrl.u32 %v262, 7
    %v264 = vsub.s32 0, %v263
    %v265 = vrot.slane %v260, %v264
    %v283 = vunpack.c.l.b16 %v244
    %v284 = vunpack.c.l.b16 %v245
    %v285 = vunpack.c.l.b16 %v246
    %v286 = vunpack.c.l.b16 %v247
    %v287 = vunpack.c.l.b16 %v248
    %v288 = vunpack.c.l.b16 %v249
    %v289 = vunpack.c.l.b16 %v250
    %v290 = vunpack.c.l.b16 %v251
    %v291 = vunpack.c.l.b16 %v252
    %v292 = vunpack.c.l.b16 %v253
    %v293 = vunpack.c.l.b16 %v254
    %v294 = vunpack.c.l.b16 %v255
    %v295 = vunpack.c.l.b16 %v256
    %v296 = vunpack.c.l.b16 %v257
    %v297 = vunpack.c.l.b16 %v258
    %v298 = vunpack.c.l.b16 %v259
    %v299 = vpack.c.b16 %v284, %v283
    %v300 = vpack.c.b16 %v286, %v285
    %v301 = vpack.c.b16 %v288, %v287
    %v302 = vpack.c.b16 %v290, %v289
    %v303 = vpack.c.b16 %v292, %v291
    %v304 = vpack.c.b16 %v294, %v293
    %v305 = vpack.c.b16 %v296, %v295
    %v306 = vpack.c.b16 %v298, %v297
    %315 = vmatprep.subr.bf16.mxu0 0
    %316 = vmatpush1.bf16.msra.mxu0 %v306
    %317 = vmatprep.subr.bf16.mxu0 0
    %318 = vmatpush1.bf16.msra.mxu0 %v305
    %319 = vmatprep.subr.bf16.mxu0 0
    %320 = vmatpush1.bf16.msra.mxu0 %v304
    %321 = vmatprep.subr.bf16.mxu0 0
    %322 = vmatpush1.bf16.msra.mxu0 %v303
    %323 = vmatprep.subr.bf16.mxu0 0
    %324 = vmatpush1.bf16.msra.mxu0 %v302
    %325 = vmatprep.subr.bf16.mxu0 0
    %326 = vmatpush1.bf16.msra.mxu0 %v301
    %327 = vmatprep.subr.bf16.mxu0 0
    %328 = vmatpush1.bf16.msra.mxu0 %v300
    %329 = vmatprep.subr.bf16.mxu0 0
    %330 = vmatpush1.bf16.msra.mxu0 %v299
    %331 = vmatprep.subr.bf16.mxu0 0
    %332 = vmatpush2.bf16.msra.mxu0 0
    %333 = vmatprep.subr.bf16.mxu0 0
    %334 = vmatpush2.bf16.msra.mxu0 0
    %335 = vmatprep.subr.bf16.mxu0 0
    %336 = vmatpush2.bf16.msra.mxu0 0
    %337 = vmatprep.subr.bf16.mxu0 0
    %338 = vmatpush2.bf16.msra.mxu0 0
    %339 = vmatprep.subr.bf16.mxu0 0
    %340 = vmatpush2.bf16.msra.mxu0 0
    %341 = vmatprep.subr.bf16.mxu0 0
    %342 = vmatpush2.bf16.msra.mxu0 0
    %343 = vmatprep.subr.bf16.mxu0 0
    %344 = vmatpush2.bf16.msra.mxu0 0
    %345 = vmatprep.subr.bf16.mxu0 0
    %346 = vmatpush2.bf16.msra.mxu0 0
    %347 = vmatprep.mubr.bf16.mxu0 0
    %348 = vmatmul.mubr.bf16.gmra.mxu0 %v243
    %v349 = vpop.f32.mrf.mxu0
    %v350 = vadd.f32 %v265, %v349
    %v351 = vpop.f32.mrf.mxu0
    %v352 = vpop.f32.mrf.mxu0
    %v353 = vpop.f32.mrf.mxu0
    %354 = vdwg.mxu0
    %v355 = vmax.f32 %v350, 0.0
    %v356 = vpack.c.bf16 %v355, %v355
    %v357 = vld [vmem:[%s5] sm:$0xf]
    %v358 = vld [vmem:[%s5 + $0x4] sm:$0xf]
    %v359 = vld [vmem:[%s5 + $0x8] sm:$0xf]
    %v360 = vld [vmem:[%s5 + $0xc] sm:$0xf]
    %v361 = vld [vmem:[%s5 + $0x10] sm:$0xf]
    %v362 = vld [vmem:[%s5 + $0x14] sm:$0xf]
    %v363 = vld [vmem:[%s5 + $0x18] sm:$0xf]
    %v364 = vld [vmem:[%s5 + $0x1c] sm:$0xf]
    %v365 = vld [vmem:[%s5 + $0x20] sm:$0xf]
    %v366 = vld [vmem:[%s5 + $0x24] sm:$0xf]
    %v367 = vld [vmem:[%s5 + $0x28] sm:$0xf]
    %v368 = vld [vmem:[%s5 + $0x2c] sm:$0xf]
    %v369 = vld [vmem:[%s5 + $0x30] sm:$0xf]
    %v370 = vld [vmem:[%s5 + $0x34] sm:$0xf]
    %v371 = vld [vmem:[%s5 + $0x38] sm:$0xf]
    %v372 = vld [vmem:[%s5 + $0x3c] sm:$0xf]
    %v373 = vld [vmem:[%s6] sm:$0x1]
    %v375 = vlaneseq
    %v376 = vshrl.u32 %v375, 7
    %v377 = vsub.s32 0, %v376
    %v378 = vrot.slane %v373, %v377
    %v396 = vunpack.c.l.b16 %v357
    %v397 = vunpack.c.l.b16 %v358
    %v398 = vunpack.c.l.b16 %v359
    %v399 = vunpack.c.l.b16 %v360
    %v400 = vunpack.c.l.b16 %v361
    %v401 = vunpack.c.l.b16 %v362
    %v402 = vunpack.c.l.b16 %v363
    %v403 = vunpack.c.l.b16 %v364
    %v404 = vunpack.c.l.b16 %v365
    %v405 = vunpack.c.l.b16 %v366
    %v406 = vunpack.c.l.b16 %v367
    %v407 = vunpack.c.l.b16 %v368
    %v408 = vunpack.c.l.b16 %v369
    %v409 = vunpack.c.l.b16 %v370
    %v410 = vunpack.c.l.b16 %v371
    %v411 = vunpack.c.l.b16 %v372
    %v412 = vpack.c.b16 %v397, %v396
    %v413 = vpack.c.b16 %v399, %v398
    %v414 = vpack.c.b16 %v401, %v400
    %v415 = vpack.c.b16 %v403, %v402
    %v416 = vpack.c.b16 %v405, %v404
    %v417 = vpack.c.b16 %v407, %v406
    %v418 = vpack.c.b16 %v409, %v408
    %v419 = vpack.c.b16 %v411, %v410
    %428 = vmatprep.subr.bf16.mxu0 0
    %429 = vmatpush1.bf16.msra.mxu0 %v419
    %430 = vmatprep.subr.bf16.mxu0 0
    %431 = vmatpush1.bf16.msra.mxu0 %v418
    %432 = vmatprep.subr.bf16.mxu0 0
    %433 = vmatpush1.bf16.msra.mxu0 %v417
    %434 = vmatprep.subr.bf16.mxu0 0
    %435 = vmatpush1.bf16.msra.mxu0 %v416
    %436 = vmatprep.subr.bf16.mxu0 0
    %437 = vmatpush1.bf16.msra.mxu0 %v415
    %438 = vmatprep.subr.bf16.mxu0 0
    %439 = vmatpush1.bf16.msra.mxu0 %v414
    %440 = vmatprep.subr.bf16.mxu0 0
    %441 = vmatpush1.bf16.msra.mxu0 %v413
    %442 = vmatprep.subr.bf16.mxu0 0
    %443 = vmatpush1.bf16.msra.mxu0 %v412
    %444 = vmatprep.subr.bf16.mxu0 0
    %445 = vmatpush2.bf16.msra.mxu0 0
    %446 = vmatprep.subr.bf16.mxu0 0
    %447 = vmatpush2.bf16.msra.mxu0 0
    %448 = vmatprep.subr.bf16.mxu0 0
    %449 = vmatpush2.bf16.msra.mxu0 0
    %450 = vmatprep.subr.bf16.mxu0 0
    %451 = vmatpush2.bf16.msra.mxu0 0
    %452 = vmatprep.subr.bf16.mxu0 0
    %453 = vmatpush2.bf16.msra.mxu0 0
    %454 = vmatprep.subr.bf16.mxu0 0
    %455 = vmatpush2.bf16.msra.mxu0 0
    %456 = vmatprep.subr.bf16.mxu0 0
    %457 = vmatpush2.bf16.msra.mxu0 0
    %458 = vmatprep.subr.bf16.mxu0 0
    %459 = vmatpush2.bf16.msra.mxu0 0
    %460 = vmatprep.mubr.bf16.mxu0 0
    %461 = vmatmul.mubr.bf16.gmra.mxu0 %v356
    %v462 = vpop.f32.mrf.mxu0
    %v463 = vadd.f32 %v378, %v462
    %v464 = vpop.f32.mrf.mxu0
    %v465 = vpop.f32.mrf.mxu0
    %v466 = vpop.f32.mrf.mxu0
    %467 = vdwg.mxu0
    %v468 = vpack.c.bf16 %v463, %v463
    %469 = vst [vmem:[%s7] sm:$0xf] %v468
    // Predicated region
    $region38: #{_lambda_.1} parent=1 // pred_check
      _
    $region39: #{_lambda_.1} parent=1 // pred_check_branch
      %471 = sbr.rel (0) target = $region41
    $region40: #{_lambda_.1} parent=1 // pred_region
      _
    $region41: #{_lambda_.1} parent=1 // pred_fallthru
      _
    // Predicated region
    $region42: #{_lambda_.1} parent=1 // pred_check
      _
    $region43: #{_lambda_.1} parent=1 // pred_check_branch
      %473 = sbr.rel (0) target = $region45
    $region44: #{_lambda_.1} parent=1 // pred_region
      _
    $region45: #{_lambda_.1} parent=1 // pred_fallthru
      _
    %474 = vsyncpa [#allocation3], 1
    %475 = vsyncpa [#allocation5], 1

</llo_original>
